<compile_context>
chip_gen: v7x
topology: tpu7x:2x2x1
jax: 0.10.0
libtpu: 0.0.40
codegen_flags: <defaults>
</compile_context>

<pallas_src>
from functools import partial

import jax
import jax.numpy as jnp
import numpy as np
from jax.experimental import pallas as pl
from jax.experimental.pallas import tpu as pltpu


def _fused_mlp_kernel(x_ref, w1_ref, b1_ref, w2_ref, b2_ref, w3_ref, b3_ref, o_ref):
    # One grid step: three MXU matmuls covering every conv group at once.
    h1 = jax.nn.sigmoid(
        jnp.dot(x_ref[...], w1_ref[...], preferred_element_type=jnp.float32)
        + b1_ref[...])                                                    # (B, G*H)
    h2 = jax.nn.sigmoid(
        jnp.dot(h1, w2_ref[...], preferred_element_type=jnp.float32)
        + b2_ref[...])                                                    # (B, G*H)
    o_ref[...] = (jnp.dot(h2, w3_ref[...], preferred_element_type=jnp.float32)
                  + b3_ref[...])                                          # (B, G)


def fold_params(params, causal_matrix, alpha, beta):
    """Fold mask / alpha / beta into the weights and build block-diag matrices."""
    n_var, K, H = params["w1"].shape
    eye = jnp.eye(n_var, dtype=jnp.float32)

    # conv1: mask folded into weights, then block-diagonal (G*K, G*H).
    keep = (causal_matrix != 0).astype(jnp.float32).reshape(n_var, K)
    w1m = keep[:, :, None] * params["w1"]                                 # (G, K, H)
    w1_bd = jnp.einsum("gkh,gf->gkfh", w1m, eye).reshape(n_var * K, n_var * H)
    b1 = params["b1"].reshape(1, n_var * H)

    # conv2: block-diagonal (G*H, G*H).
    w2_bd = jnp.einsum("gij,gf->gifj", params["w2"], eye).reshape(n_var * H, n_var * H)
    b2 = params["b2"].reshape(1, n_var * H)

    # conv3: alpha folded into weights, group g feeds output column g -> (G*H, G).
    w3a = params["w3"][..., 0] * alpha[:, None]                           # (G, H)
    w3_bd = jnp.einsum("gh,gf->ghf", w3a, eye).reshape(n_var * H, n_var)
    b3 = (alpha * params["b3"] + beta).reshape(1, n_var)

    return w1_bd, b1, w2_bd, b2, w3_bd, b3


@jax.jit
def coupled_nonlinear_forward(x, params, causal_matrix, alpha, beta):
    """x: (B, n_var, n_var, max_lags) float32 (PyTorch NCHW). Returns (B, n_var)."""
    B, n_var, n_var2, max_lags = x.shape
    assert n_var == n_var2
    K = n_var * max_lags

    w1_bd, b1, w2_bd, b2, w3_bd, b3 = fold_params(params, causal_matrix, alpha, beta)
    x_flat = x.reshape(B, n_var * K)      # contiguous reshape, no transpose / extra copy

    def full_spec(shape):
        nd = len(shape)
        return pl.BlockSpec(shape, lambda i: (0,) * nd)  # whole array resident in VMEM

    out = pl.pallas_call(
        _fused_mlp_kernel,
        out_shape=jax.ShapeDtypeStruct((B, n_var), jnp.float32),
        grid_spec=pltpu.PrefetchScalarGridSpec(
            num_scalar_prefetch=0,
            grid=(1,),
            in_specs=[full_spec(a.shape)
                      for a in (x_flat, w1_bd, b1, w2_bd, b2, w3_bd, b3)],
            out_specs=full_spec((B, n_var)),
        ),
        compiler_params=pltpu.CompilerParams(
            dimension_semantics=("parallel",)),   # no carried state; lets v7x shard
    )(x_flat, w1_bd, b1, w2_bd, b2, w3_bd, b3)

    return out                                                            # (B, n_var)


def init_params(key, n_var, max_lags, hidden_dim):
    """Deterministic init mirroring the grouped-conv parameter shapes.

    conv1: (n_var*H, 1, n_var, max_lags) -> per-group matmul (n_var, K, H)
    conv2: (n_var*H, H, 1, 1)            -> per-group matmul (n_var, H, H)
    conv3: (n_var,   H, 1, 1)            -> per-group matmul (n_var, H, 1)
    """
    K = n_var * max_lags
    H = hidden_dim
    k1, k2, k3, k4, k5, k6 = jax.random.split(key, 6)
    bnd1 = 1.0 / np.sqrt(K)   # fan_in of conv1 = 1 * n_var * max_lags
    bnd2 = 1.0 / np.sqrt(H)   # fan_in of conv2/conv3 = H
    # conv1 torch weight layout (n_var, H, n_var, max_lags) -> (n_var, K, H)
    w1_t = jax.random.uniform(k1, (n_var, H, n_var, max_lags), jnp.float32, -bnd1, bnd1)
    w1 = jnp.transpose(w1_t.reshape(n_var, H, K), (0, 2, 1))
    b1 = jax.random.uniform(k2, (n_var, H), jnp.float32, -bnd1, bnd1)
    # conv2 torch weight layout (n_var, H_out, H_in) -> (n_var, H_in, H_out)
    w2_t = jax.random.uniform(k3, (n_var, H, H), jnp.float32, -bnd2, bnd2)
    w2 = jnp.transpose(w2_t, (0, 2, 1))
    b2 = jax.random.uniform(k4, (n_var, H), jnp.float32, -bnd2, bnd2)
    # conv3 torch weight layout (n_var, H) -> (n_var, H, 1)
    w3 = jax.random.uniform(k5, (n_var, H), jnp.float32, -bnd2, bnd2)[..., None]
    b3 = jax.random.uniform(k6, (n_var,), jnp.float32, -bnd2, bnd2)
    return {"w1": w1, "b1": b1, "w2": w2, "b2": b2, "w3": w3, "b3": b3}


def reference_forward(x, params, causal_matrix, alpha, beta):
    """Pure-JAX reference replicating the PyTorch forward semantics (unfolded)."""
    B, n_var, _, max_lags = x.shape
    K = n_var * max_lags
    keep = (causal_matrix != 0).astype(jnp.float32)[None]       # (1, n_var, n_var, max_lags)
    xm = (x * keep).reshape(B, n_var, K)                         # masked_fill -> 0
    h1 = jax.nn.sigmoid(jnp.einsum("bgk,gkh->bgh", xm, params["w1"]) + params["b1"][None])
    h2 = jax.nn.sigmoid(jnp.einsum("bgh,ghj->bgj", h1, params["w2"]) + params["b2"][None])
    out = jnp.einsum("bgh,gho->bgo", h2, params["w3"])[..., 0] + params["b3"][None]
    return alpha[None] * out + beta[None]                        # (B, n_var)


if __name__ == "__main__":
    n_var, max_lags, hidden_dim, batch = 4, 4, 16, 8

    key = jax.random.PRNGKey(0)
    k_cm, k_x, k_p, k_a, k_b = jax.random.split(key, 5)

    # Deterministic synthetic causal matrix (n_var, n_var, max_lags), ensure non-empty.
    causal = jax.random.bernoulli(k_cm, 0.5, (n_var, n_var, max_lags)).astype(jnp.float32)
    causal = causal.at[:, 0, 0].set(1.0)

    # Buffers alpha / beta as in the module (ones/zeros at init, arbitrary after
    # fit_random); use non-trivial values here to exercise the output affine fold.
    alpha = jax.random.uniform(k_a, (n_var,), jnp.float32, 0.5, 1.5)
    beta = jax.random.uniform(k_b, (n_var,), jnp.float32, -0.5, 0.5)

    params = init_params(k_p, n_var, max_lags, hidden_dim)

    max_input_value = 2.0
    x = jax.random.uniform(k_x, (batch, n_var, n_var, max_lags), jnp.float32,
                           -max_input_value, max_input_value)

    y = coupled_nonlinear_forward(x, params, causal, alpha, beta)
    y = jax.block_until_ready(y)

    y_ref = reference_forward(x, params, causal, alpha, beta)
    np.testing.assert_allclose(np.asarray(y), np.asarray(y_ref), rtol=1e-5, atol=1e-5)

    assert y.shape == (batch, n_var) and y.dtype == jnp.float32
    print("KERNEL_OK")
</pallas_src>

<mosaic_0001>
module attributes {stable_mosaic.version = 11 : i64} {
  func.func @_fused_mlp_kernel(%arg0: i32, %arg1: memref<8x64xf32, #tpu.memory_space<vmem>>, %arg2: memref<64x64xf32, #tpu.memory_space<vmem>>, %arg3: memref<1x64xf32, #tpu.memory_space<vmem>>, %arg4: memref<64x64xf32, #tpu.memory_space<vmem>>, %arg5: memref<1x64xf32, #tpu.memory_space<vmem>>, %arg6: memref<64x4xf32, #tpu.memory_space<vmem>>, %arg7: memref<1x4xf32, #tpu.memory_space<vmem>>, %arg8: memref<8x4xf32, #tpu.memory_space<vmem>>) attributes {dimension_semantics = [#tpu.dimension_semantics<parallel>], iteration_bounds = array<i64: 1>, scalar_prefetch = 0 : i64, scratch_operands = 0 : i64, tpu.core_type = #tpu.core_type<tc>, window_params = [{pipeline_mode = #tpu.pipeline_mode<synchronous>, transform_indices = @transform_0, window_bounds = array<i64: 8, 64>}, {pipeline_mode = #tpu.pipeline_mode<synchronous>, transform_indices = @transform_1, window_bounds = array<i64: 64, 64>}, {pipeline_mode = #tpu.pipeline_mode<synchronous>, transform_indices = @transform_2, window_bounds = array<i64: 1, 64>}, {pipeline_mode = #tpu.pipeline_mode<synchronous>, transform_indices = @transform_3, window_bounds = array<i64: 64, 64>}, {pipeline_mode = #tpu.pipeline_mode<synchronous>, transform_indices = @transform_4, window_bounds = array<i64: 1, 64>}, {pipeline_mode = #tpu.pipeline_mode<synchronous>, transform_indices = @transform_5, window_bounds = array<i64: 64, 4>}, {pipeline_mode = #tpu.pipeline_mode<synchronous>, transform_indices = @transform_6, window_bounds = array<i64: 1, 4>}, {pipeline_mode = #tpu.pipeline_mode<synchronous>, transform_indices = @transform_7, window_bounds = array<i64: 8, 4>}]} {
    %c0 = arith.constant 0 : index
    %c0_0 = arith.constant 0 : index
    %0 = vector.load %arg1[%c0, %c0_0] : memref<8x64xf32, #tpu.memory_space<vmem>>, vector<8x64xf32>
    %c0_1 = arith.constant 0 : index
    %c0_2 = arith.constant 0 : index
    %1 = vector.load %arg2[%c0_1, %c0_2] : memref<64x64xf32, #tpu.memory_space<vmem>>, vector<64x64xf32>
    %cst = arith.constant dense<0.000000e+00> : vector<8x64xf32>
    %2 = tpu.matmul %0, %1, %cst {dimension_numbers = #tpu.dot_dimension_numbers<[1], [0], [0], [1], [0, 0, 1, 1], [], []>} : vector<8x64xf32>, vector<64x64xf32>, vector<8x64xf32> -> vector<8x64xf32>
    %c0_3 = arith.constant 0 : index
    %c0_4 = arith.constant 0 : index
    %3 = vector.load %arg3[%c0_3, %c0_4] : memref<1x64xf32, #tpu.memory_space<vmem>>, vector<1x64xf32>
    %4 = vector.broadcast %3 : vector<1x64xf32> to vector<8x64xf32>
    %5 = arith.addf %2, %4 : vector<8x64xf32>
    %6 = arith.negf %5 : vector<8x64xf32>
    %7 = math.exp %6 : vector<8x64xf32>
    %cst_5 = arith.constant 1.000000e+00 : f32
    %8 = vector.broadcast %cst_5 : f32 to vector<8x64xf32>
    %9 = arith.addf %8, %7 : vector<8x64xf32>
    %10 = arith.divf %8, %9 : vector<8x64xf32>
    %c0_6 = arith.constant 0 : index
    %c0_7 = arith.constant 0 : index
    %11 = vector.load %arg4[%c0_6, %c0_7] : memref<64x64xf32, #tpu.memory_space<vmem>>, vector<64x64xf32>
    %cst_8 = arith.constant dense<0.000000e+00> : vector<8x64xf32>
    %12 = tpu.matmul %10, %11, %cst_8 {dimension_numbers = #tpu.dot_dimension_numbers<[1], [0], [0], [1], [0, 0, 1, 1], [], []>} : vector<8x64xf32>, vector<64x64xf32>, vector<8x64xf32> -> vector<8x64xf32>
    %c0_9 = arith.constant 0 : index
    %c0_10 = arith.constant 0 : index
    %13 = vector.load %arg5[%c0_9, %c0_10] : memref<1x64xf32, #tpu.memory_space<vmem>>, vector<1x64xf32>
    %14 = vector.broadcast %13 : vector<1x64xf32> to vector<8x64xf32>
    %15 = arith.addf %12, %14 : vector<8x64xf32>
    %16 = arith.negf %15 : vector<8x64xf32>
    %17 = math.exp %16 : vector<8x64xf32>
    %cst_11 = arith.constant 1.000000e+00 : f32
    %18 = vector.broadcast %cst_11 : f32 to vector<8x64xf32>
    %19 = arith.addf %18, %17 : vector<8x64xf32>
    %20 = arith.divf %18, %19 : vector<8x64xf32>
    %c0_12 = arith.constant 0 : index
    %c0_13 = arith.constant 0 : index
    %21 = vector.load %arg6[%c0_12, %c0_13] : memref<64x4xf32, #tpu.memory_space<vmem>>, vector<64x4xf32>
    %cst_14 = arith.constant dense<0.000000e+00> : vector<8x4xf32>
    %22 = tpu.matmul %20, %21, %cst_14 {dimension_numbers = #tpu.dot_dimension_numbers<[1], [0], [0], [1], [0, 0, 1, 1], [], []>} : vector<8x64xf32>, vector<64x4xf32>, vector<8x4xf32> -> vector<8x4xf32>
    %c0_15 = arith.constant 0 : index
    %c0_16 = arith.constant 0 : index
    %23 = vector.load %arg7[%c0_15, %c0_16] : memref<1x4xf32, #tpu.memory_space<vmem>>, vector<1x4xf32>
    %24 = vector.broadcast %23 : vector<1x4xf32> to vector<8x4xf32>
    %25 = arith.addf %22, %24 : vector<8x4xf32>
    %c0_17 = arith.constant 0 : index
    %c0_18 = arith.constant 0 : index
    %26 = vector.load %arg8[%c0_17, %c0_18] : memref<8x4xf32, #tpu.memory_space<vmem>>, vector<8x4xf32>
    tpu.vector_store %arg8[%c0_17, %c0_18], %25 {strides = array<i32>} : memref<8x4xf32, #tpu.memory_space<vmem>>, vector<8x4xf32>,
    return
  }
  func.func @transform_0(%arg0: i32) -> (i32, i32) {
    %c0_i32 = arith.constant 0 : i32
    %c0_i32_0 = arith.constant 0 : i32
    %c0_i32_1 = arith.constant 0 : i32
    return %c0_i32, %c0_i32_0 : i32, i32
  }
  func.func @transform_1(%arg0: i32) -> (i32, i32) {
    %c0_i32 = arith.constant 0 : i32
    %c0_i32_0 = arith.constant 0 : i32
    %c0_i32_1 = arith.constant 0 : i32
    return %c0_i32, %c0_i32_0 : i32, i32
  }
  func.func @transform_2(%arg0: i32) -> (i32, i32) {
    %c0_i32 = arith.constant 0 : i32
    %c0_i32_0 = arith.constant 0 : i32
    %c0_i32_1 = arith.constant 0 : i32
    return %c0_i32, %c0_i32_0 : i32, i32
  }
  func.func @transform_3(%arg0: i32) -> (i32, i32) {
    %c0_i32 = arith.constant 0 : i32
    %c0_i32_0 = arith.constant 0 : i32
    %c0_i32_1 = arith.constant 0 : i32
    return %c0_i32, %c0_i32_0 : i32, i32
  }
  func.func @transform_4(%arg0: i32) -> (i32, i32) {
    %c0_i32 = arith.constant 0 : i32
    %c0_i32_0 = arith.constant 0 : i32
    %c0_i32_1 = arith.constant 0 : i32
    return %c0_i32, %c0_i32_0 : i32, i32
  }
  func.func @transform_5(%arg0: i32) -> (i32, i32) {
    %c0_i32 = arith.constant 0 : i32
    %c0_i32_0 = arith.constant 0 : i32
    %c0_i32_1 = arith.constant 0 : i32
    return %c0_i32, %c0_i32_0 : i32, i32
  }
  func.func @transform_6(%arg0: i32) -> (i32, i32) {
    %c0_i32 = arith.constant 0 : i32
    %c0_i32_0 = arith.constant 0 : i32
    %c0_i32_1 = arith.constant 0 : i32
    return %c0_i32, %c0_i32_0 : i32, i32
  }
  func.func @transform_7(%arg0: i32) -> (i32, i32) {
    %c0_i32 = arith.constant 0 : i32
    %c0_i32_0 = arith.constant 0 : i32
    %c0_i32_1 = arith.constant 0 : i32
    return %c0_i32, %c0_i32_0 : i32, i32
  }
}

</mosaic_0001>

<llo_original>
// kernel: coupled_nonlinear_forward.1
$region0: #{coupled_nonlinear_forward.1}
  #allocation0 [shape = 'u32[]', space=smem, size = 0x4, offset = 0x4, fixed_abs, tag = 'smem constant byte address 0x4 - core index']
  #allocation1 [shape = 'u32[144,128]{1,0:T(1,128)}', space=vmem, size = 0x12000, scoped, tag = 'internal scratch']
  %s0 = inlined_call_operand.vmem [shape: f32[8,64], index: 0, kind: input, shape index: {}]
  %s1 = inlined_call_operand.vmem [shape: f32[64,64], index: 1, kind: input, shape index: {}]
  %s2 = inlined_call_operand.vmem [shape: f32[1,64], index: 2, kind: input, shape index: {}]
  %s3 = inlined_call_operand.vmem [shape: f32[64,64], index: 3, kind: input, shape index: {}]
  %s4 = inlined_call_operand.vmem [shape: f32[1,64], index: 4, kind: input, shape index: {}]
  %s5 = inlined_call_operand.vmem [shape: f32[64,4], index: 5, kind: input, shape index: {}]
  %s6 = inlined_call_operand.vmem [shape: f32[1,4], index: 6, kind: input, shape index: {}]
  %s7 = inlined_call_operand.vmem [shape: f32[8,4], index: 7, kind: output, shape index: {}]
  %s8 = sld [smem:[#allocation0]]
  $region38: #{coupled_nonlinear_forward.1} parent=0
    _
  %s10 = ssub.s32 1, %s8
  %s11 = scalar_select 0, %s10, %s8
  // Predicated region
  $region2: #{coupled_nonlinear_forward.1} parent=0 // pred_check
    _
  $region3: #{coupled_nonlinear_forward.1} parent=0 // pred_check_branch
    %13 = sbr.rel (0) target = $region5
  $region4: #{coupled_nonlinear_forward.1} parent=0 // pred_region
    _
  $region5: #{coupled_nonlinear_forward.1} parent=0 // pred_fallthru
    _
  // Predicated region
  $region6: #{coupled_nonlinear_forward.1} parent=0 // pred_check
    _
  $region7: #{coupled_nonlinear_forward.1} parent=0 // pred_check_branch
    %15 = sbr.rel (0) target = $region9
  $region8: #{coupled_nonlinear_forward.1} parent=0 // pred_region
    _
  $region9: #{coupled_nonlinear_forward.1} parent=0 // pred_fallthru
    _
  // Predicated region
  $region10: #{coupled_nonlinear_forward.1} parent=0 // pred_check
    _
  $region11: #{coupled_nonlinear_forward.1} parent=0 // pred_check_branch
    %17 = sbr.rel (0) target = $region13
  $region12: #{coupled_nonlinear_forward.1} parent=0 // pred_region
    _
  $region13: #{coupled_nonlinear_forward.1} parent=0 // pred_fallthru
    _
  // Predicated region
  $region14: #{coupled_nonlinear_forward.1} parent=0 // pred_check
    _
  $region15: #{coupled_nonlinear_forward.1} parent=0 // pred_check_branch
    %19 = sbr.rel (0) target = $region17
  $region16: #{coupled_nonlinear_forward.1} parent=0 // pred_region
    _
  $region17: #{coupled_nonlinear_forward.1} parent=0 // pred_fallthru
    _
  // Predicated region
  $region18: #{coupled_nonlinear_forward.1} parent=0 // pred_check
    _
  $region19: #{coupled_nonlinear_forward.1} parent=0 // pred_check_branch
    %21 = sbr.rel (0) target = $region21
  $region20: #{coupled_nonlinear_forward.1} parent=0 // pred_region
    _
  $region21: #{coupled_nonlinear_forward.1} parent=0 // pred_fallthru
    _
  // Predicated region
  $region22: #{coupled_nonlinear_forward.1} parent=0 // pred_check
    _
  $region23: #{coupled_nonlinear_forward.1} parent=0 // pred_check_branch
    %23 = sbr.rel (0) target = $region25
  $region24: #{coupled_nonlinear_forward.1} parent=0 // pred_region
    _
  $region25: #{coupled_nonlinear_forward.1} parent=0 // pred_fallthru
    _
  // Predicated region
  $region26: #{coupled_nonlinear_forward.1} parent=0 // pred_check
    _
  $region27: #{coupled_nonlinear_forward.1} parent=0 // pred_check_branch
    %25 = sbr.rel (0) target = $region29
  $region28: #{coupled_nonlinear_forward.1} parent=0 // pred_region
    _
  $region29: #{coupled_nonlinear_forward.1} parent=0 // pred_fallthru
    _
  %v26 = vld [vmem:[%s0] sm:$0xff]
  %v27 = vld [vmem:[%s1] sm:$0xff]
  %v28 = vld [vmem:[%s1 + $0x8] sm:$0xff]
  %v29 = vld [vmem:[%s1 + $0x10] sm:$0xff]
  %v30 = vld [vmem:[%s1 + $0x18] sm:$0xff]
  %v31 = vld [vmem:[%s1 + $0x20] sm:$0xff]
  %v32 = vld [vmem:[%s1 + $0x28] sm:$0xff]
  %v33 = vld [vmem:[%s1 + $0x30] sm:$0xff]
  %v34 = vld [vmem:[%s1 + $0x38] sm:$0xff]
  %v35 = vld [vmem:[%s2] sm:$0x1]
  %v37 = vlaneseq
  %v38 = vshrl.u32 %v37, 7
  %v39 = vsub.s32 0, %v38
  %v40 = vrot.slane %v35, %v39
  %vm42 = vcmask 523264
  %v44 = vsel %vm42, %v26, 0
  %46 = vmatprep.subr.mxu0 0.0
  %47 = vmatpush1.msra.mxu0 %v27
  %48 = vmatprep.subr.mxu0 0.0
  %49 = vmatpush1.msra.mxu0 %v28
  %50 = vmatprep.subr.mxu0 0.0
  %51 = vmatpush1.msra.mxu0 %v29
  %52 = vmatprep.subr.mxu0 0.0
  %53 = vmatpush1.msra.mxu0 %v30
  %54 = vmatprep.subr.mxu0 0.0
  %55 = vmatpush1.msra.mxu0 %v31
  %56 = vmatprep.subr.mxu0 0.0
  %57 = vmatpush1.msra.mxu0 %v32
  %58 = vmatprep.subr.mxu0 0.0
  %59 = vmatpush1.msra.mxu0 %v33
  %60 = vmatprep.subr.mxu0 0.0
  %61 = vmatpush1.msra.mxu0 %v34
  %62 = vmatprep.subr.mxu0 0.0
  %63 = vmatpush1.msra.mxu0 0.0
  %64 = vmatprep.subr.mxu0 0.0
  %65 = vmatpush1.msra.mxu0 0.0
  %66 = vmatprep.subr.mxu0 0.0
  %67 = vmatpush1.msra.mxu0 0.0
  %68 = vmatprep.subr.mxu0 0.0
  %69 = vmatpush1.msra.mxu0 0.0
  %70 = vmatprep.subr.mxu0 0.0
  %71 = vmatpush1.msra.mxu0 0.0
  %72 = vmatprep.subr.mxu0 0.0
  %73 = vmatpush1.msra.mxu0 0.0
  %74 = vmatprep.subr.mxu0 0.0
  %75 = vmatpush1.msra.mxu0 0.0
  %76 = vmatprep.subr.mxu0 0.0
  %77 = vmatpush1.msra.mxu0 0.0
  %78 = vmatprep.subr.mxu0 0.0
  %79 = vmatpush1.msra.mxu0 0.0
  %80 = vmatprep.subr.mxu0 0.0
  %81 = vmatpush1.msra.mxu0 0.0
  %82 = vmatprep.subr.mxu0 0.0
  %83 = vmatpush1.msra.mxu0 0.0
  %84 = vmatprep.subr.mxu0 0.0
  %85 = vmatpush1.msra.mxu0 0.0
  %86 = vmatprep.subr.mxu0 0.0
  %87 = vmatpush1.msra.mxu0 0.0
  %88 = vmatprep.subr.mxu0 0.0
  %89 = vmatpush1.msra.mxu0 0.0
  %90 = vmatprep.subr.mxu0 0.0
  %91 = vmatpush1.msra.mxu0 0.0
  %92 = vmatprep.subr.mxu0 0.0
  %93 = vmatpush1.msra.mxu0 0.0
  %94 = vmatprep.subr.mxu0 0.0
  %95 = vmatpush1.msra.mxu0 0.0
  %96 = vmatprep.subr.mxu0 0.0
  %97 = vmatpush1.msra.mxu0 0.0
  %98 = vmatprep.subr.mxu0 0.0
  %99 = vmatpush1.msra.mxu0 0.0
  %100 = vmatprep.subr.mxu0 0.0
  %101 = vmatpush1.msra.mxu0 0.0
  %102 = vmatprep.subr.mxu0 0.0
  %103 = vmatpush1.msra.mxu0 0.0
  %104 = vmatprep.subr.mxu0 0.0
  %105 = vmatpush1.msra.mxu0 0.0
  %106 = vmatprep.subr.mxu0 0.0
  %107 = vmatpush1.msra.mxu0 0.0
  %108 = vmatprep.subr.mxu0 0.0
  %109 = vmatpush1.msra.mxu0 0.0
  %110 = vmatprep.mubr.f32.mxu0 0.0
  %111 = vmatmul.mubr.f32.gmra.mrb[0].mxu0 %v44
  %v112 = vpop.f32.mrb[0].mxu0
  %v113 = vadd.f32 %v40, %v112
  %v114 = vpop.f32.mrb[0].mxu0
  %115 = vdwg.mxu0
  %v116 = vxor.u32 %v113, 2147483648
  %v117 = vmul.f32 %v116, 1.442695
  %v118 = vpow.pop %v117
  %v119 = vadd.f32 %v118, 1.0
  %v120 = vrcp.pop %v119
  %v121 = vmul.f32 1.0, %v120
  %v122 = vld [vmem:[%s3] sm:$0xff]
  %v123 = vld [vmem:[%s3 + $0x8] sm:$0xff]
  %v124 = vld [vmem:[%s3 + $0x10] sm:$0xff]
  %v125 = vld [vmem:[%s3 + $0x18] sm:$0xff]
  %v126 = vld [vmem:[%s3 + $0x20] sm:$0xff]
  %v127 = vld [vmem:[%s3 + $0x28] sm:$0xff]
  %v128 = vld [vmem:[%s3 + $0x30] sm:$0xff]
  %v129 = vld [vmem:[%s3 + $0x38] sm:$0xff]
  %v130 = vld [vmem:[%s4] sm:$0x1]
  %v132 = vlaneseq
  %v133 = vshrl.u32 %v132, 7
  %v134 = vsub.s32 0, %v133
  %v135 = vrot.slane %v130, %v134
  %v138 = vsel %vm42, %v121, 0
  %140 = vmatprep.subr.mxu0 0.0
  %141 = vmatpush1.msra.mxu0 %v122
  %142 = vmatprep.subr.mxu0 0.0
  %143 = vmatpush1.msra.mxu0 %v123
  %144 = vmatprep.subr.mxu0 0.0
  %145 = vmatpush1.msra.mxu0 %v124
  %146 = vmatprep.subr.mxu0 0.0
  %147 = vmatpush1.msra.mxu0 %v125
  %148 = vmatprep.subr.mxu0 0.0
  %149 = vmatpush1.msra.mxu0 %v126
  %150 = vmatprep.subr.mxu0 0.0
  %151 = vmatpush1.msra.mxu0 %v127
  %152 = vmatprep.subr.mxu0 0.0
  %153 = vmatpush1.msra.mxu0 %v128
  %154 = vmatprep.subr.mxu0 0.0
  %155 = vmatpush1.msra.mxu0 %v129
  %156 = vmatprep.subr.mxu0 0.0
  %157 = vmatpush1.msra.mxu0 0.0
  %158 = vmatprep.subr.mxu0 0.0
  %159 = vmatpush1.msra.mxu0 0.0
  %160 = vmatprep.subr.mxu0 0.0
  %161 = vmatpush1.msra.mxu0 0.0
  %162 = vmatprep.subr.mxu0 0.0
  %163 = vmatpush1.msra.mxu0 0.0
  %164 = vmatprep.subr.mxu0 0.0
  %165 = vmatpush1.msra.mxu0 0.0
  %166 = vmatprep.subr.mxu0 0.0
  %167 = vmatpush1.msra.mxu0 0.0
  %168 = vmatprep.subr.mxu0 0.0
  %169 = vmatpush1.msra.mxu0 0.0
  %170 = vmatprep.subr.mxu0 0.0
  %171 = vmatpush1.msra.mxu0 0.0
  %172 = vmatprep.subr.mxu0 0.0
  %173 = vmatpush1.msra.mxu0 0.0
  %174 = vmatprep.subr.mxu0 0.0
  %175 = vmatpush1.msra.mxu0 0.0
  %176 = vmatprep.subr.mxu0 0.0
  %177 = vmatpush1.msra.mxu0 0.0
  %178 = vmatprep.subr.mxu0 0.0
  %179 = vmatpush1.msra.mxu0 0.0
  %180 = vmatprep.subr.mxu0 0.0
  %181 = vmatpush1.msra.mxu0 0.0
  %182 = vmatprep.subr.mxu0 0.0
  %183 = vmatpush1.msra.mxu0 0.0
  %184 = vmatprep.subr.mxu0 0.0
  %185 = vmatpush1.msra.mxu0 0.0
  %186 = vmatprep.subr.mxu0 0.0
  %187 = vmatpush1.msra.mxu0 0.0
  %188 = vmatprep.subr.mxu0 0.0
  %189 = vmatpush1.msra.mxu0 0.0
  %190 = vmatprep.subr.mxu0 0.0
  %191 = vmatpush1.msra.mxu0 0.0
  %192 = vmatprep.subr.mxu0 0.0
  %193 = vmatpush1.msra.mxu0 0.0
  %194 = vmatprep.subr.mxu0 0.0
  %195 = vmatpush1.msra.mxu0 0.0
  %196 = vmatprep.subr.mxu0 0.0
  %197 = vmatpush1.msra.mxu0 0.0
  %198 = vmatprep.subr.mxu0 0.0
  %199 = vmatpush1.msra.mxu0 0.0
  %200 = vmatprep.subr.mxu0 0.0
  %201 = vmatpush1.msra.mxu0 0.0
  %202 = vmatprep.subr.mxu0 0.0
  %203 = vmatpush1.msra.mxu0 0.0
  %204 = vmatprep.mubr.f32.mxu0 0.0
  %205 = vmatmul.mubr.f32.gmra.mrb[0].mxu0 %v138
  %v206 = vpop.f32.mrb[0].mxu0
  %v207 = vadd.f32 %v135, %v206
  %v208 = vpop.f32.mrb[0].mxu0
  %209 = vdwg.mxu0
  %v210 = vxor.u32 %v207, 2147483648
  %v211 = vmul.f32 %v210, 1.442695
  %v212 = vpow.pop %v211
  %v213 = vadd.f32 %v212, 1.0
  %v214 = vrcp.pop %v213
  %v215 = vmul.f32 1.0, %v214
  %v216 = vld [vmem:[%s5] sm:$0xff]
  %v217 = vld [vmem:[%s5 + $0x8] sm:$0xff]
  %v218 = vld [vmem:[%s5 + $0x10] sm:$0xff]
  %v219 = vld [vmem:[%s5 + $0x18] sm:$0xff]
  %v220 = vld [vmem:[%s5 + $0x20] sm:$0xff]
  %v221 = vld [vmem:[%s5 + $0x28] sm:$0xff]
  %v222 = vld [vmem:[%s5 + $0x30] sm:$0xff]
  %v223 = vld [vmem:[%s5 + $0x38] sm:$0xff]
  %v224 = vld [vmem:[%s6] sm:$0x1]
  %v226 = vlaneseq
  %v227 = vshrl.u32 %v226, 7
  %v228 = vsub.s32 0, %v227
  %v229 = vrot.slane %v224, %v228
  %v232 = vsel %vm42, %v215, 0
  %234 = vmatprep.subr.mxu0 0.0
  %235 = vmatpush1.msra.mxu0 %v216
  %236 = vmatprep.subr.mxu0 0.0
  %237 = vmatpush1.msra.mxu0 %v217
  %238 = vmatprep.subr.mxu0 0.0
  %239 = vmatpush1.msra.mxu0 %v218
  %240 = vmatprep.subr.mxu0 0.0
  %241 = vmatpush1.msra.mxu0 %v219
  %242 = vmatprep.subr.mxu0 0.0
  %243 = vmatpush1.msra.mxu0 %v220
  %244 = vmatprep.subr.mxu0 0.0
  %245 = vmatpush1.msra.mxu0 %v221
  %246 = vmatprep.subr.mxu0 0.0
  %247 = vmatpush1.msra.mxu0 %v222
  %248 = vmatprep.subr.mxu0 0.0
  %249 = vmatpush1.msra.mxu0 %v223
  %250 = vmatprep.subr.mxu0 0.0
  %251 = vmatpush1.msra.mxu0 0.0
  %252 = vmatprep.subr.mxu0 0.0
  %253 = vmatpush1.msra.mxu0 0.0
  %254 = vmatprep.subr.mxu0 0.0
  %255 = vmatpush1.msra.mxu0 0.0
  %256 = vmatprep.subr.mxu0 0.0
  %257 = vmatpush1.msra.mxu0 0.0
  %258 = vmatprep.subr.mxu0 0.0
  %259 = vmatpush1.msra.mxu0 0.0
  %260 = vmatprep.subr.mxu0 0.0
  %261 = vmatpush1.msra.mxu0 0.0
  %262 = vmatprep.subr.mxu0 0.0
  %263 = vmatpush1.msra.mxu0 0.0
  %264 = vmatprep.subr.mxu0 0.0
  %265 = vmatpush1.msra.mxu0 0.0
  %266 = vmatprep.subr.mxu0 0.0
  %267 = vmatpush1.msra.mxu0 0.0
  %268 = vmatprep.subr.mxu0 0.0
  %269 = vmatpush1.msra.mxu0 0.0
  %270 = vmatprep.subr.mxu0 0.0
  %271 = vmatpush1.msra.mxu0 0.0
  %272 = vmatprep.subr.mxu0 0.0
  %273 = vmatpush1.msra.mxu0 0.0
  %274 = vmatprep.subr.mxu0 0.0
  %275 = vmatpush1.msra.mxu0 0.0
  %276 = vmatprep.subr.mxu0 0.0
  %277 = vmatpush1.msra.mxu0 0.0
  %278 = vmatprep.subr.mxu0 0.0
  %279 = vmatpush1.msra.mxu0 0.0
  %280 = vmatprep.subr.mxu0 0.0
  %281 = vmatpush1.msra.mxu0 0.0
  %282 = vmatprep.subr.mxu0 0.0
  %283 = vmatpush1.msra.mxu0 0.0
  %284 = vmatprep.subr.mxu0 0.0
  %285 = vmatpush1.msra.mxu0 0.0
  %286 = vmatprep.subr.mxu0 0.0
  %287 = vmatpush1.msra.mxu0 0.0
  %288 = vmatprep.subr.mxu0 0.0
  %289 = vmatpush1.msra.mxu0 0.0
  %290 = vmatprep.subr.mxu0 0.0
  %291 = vmatpush1.msra.mxu0 0.0
  %292 = vmatprep.subr.mxu0 0.0
  %293 = vmatpush1.msra.mxu0 0.0
  %294 = vmatprep.subr.mxu0 0.0
  %295 = vmatpush1.msra.mxu0 0.0
  %296 = vmatprep.subr.mxu0 0.0
  %297 = vmatpush1.msra.mxu0 0.0
  %298 = vmatprep.mubr.f32.mxu0 0.0
  %299 = vmatmul.mubr.f32.gmra.mrb[0].mxu0 %v232
  %v300 = vpop.f32.mrb[0].mxu0
  %v301 = vadd.f32 %v229, %v300
  %v302 = vpop.f32.mrb[0].mxu0
  %303 = vdwg.mxu0
  %vm304 = vcmask 31744
  %305 = vst.msk [vmem:[%s7] sm:$0xff] %vm304, %v301
  // Predicated region
  $region30: #{coupled_nonlinear_forward.1} parent=0 // pred_check
    _
  $region31: #{coupled_nonlinear_forward.1} parent=0 // pred_check_branch
    %307 = sbr.rel (0) target = $region33
  $region32: #{coupled_nonlinear_forward.1} parent=0 // pred_region
    _
  $region33: #{coupled_nonlinear_forward.1} parent=0 // pred_fallthru
    _
  // Predicated region
  $region34: #{coupled_nonlinear_forward.1} parent=0 // pred_check
    _
  $region35: #{coupled_nonlinear_forward.1} parent=0 // pred_check_branch
    %309 = sbr.rel (0) target = $region37
  $region36: #{coupled_nonlinear_forward.1} parent=0 // pred_region
    _
  $region37: #{coupled_nonlinear_forward.1} parent=0 // pred_fallthru
    _

</llo_original>
